<compile_context>
chip_gen: v5e
topology: v5e:2x2
jax: 0.10.0
libtpu: 0.0.40
codegen_flags: <defaults>
</compile_context>

<pallas_src>
import math

import jax
import jax.numpy as jnp
from jax.experimental import pallas as pl
from jax.experimental.pallas import tpu as pltpu


_LANE = 128
_SUBLANE = 8
# Conservative per-call tile budget: fits v7x (64 MiB physical / 32 MiB default
# scoped VMEM) and leaves headroom for compiler scratch on every generation.
_VMEM_TILE_BUDGET = 24 * 1024 * 1024
_VMEM_LIMIT_BYTES = 48 * 1024 * 1024


def _round_up(x, m):
    return ((x + m - 1) // m) * m


def _pick_tile(dim, pref, align):
    """Largest multiple of `align` <= min(pref, dim) that divides `dim`.

    `dim` must already be a multiple of `align` (we pad first), so this always
    succeeds (worst case: `align`)."""
    t = min(pref, dim)
    t = max(align, (t // align) * align)
    while dim % t != 0:
        t -= align
    return t


def _make_kernel(use_bias, single_k):
    """Build the kernel body for the (bias?, single-K?) combination.

    Mask is binary (0/1 connectivity map), so `kernel * map` is implemented as
    a compare+select: jnp.where(map != 0, kernel, 0).
    """
    # TODO(synk): bit-pack the binary map (8 bits/byte, unpack with iota+shift)
    # if profiling shows the int8 mask stream is a meaningful HBM fraction.

    if single_k:
        if use_bias:
            def body(x_ref, k_ref, m_ref, b_ref, o_ref):
                tt = jnp.where(m_ref[...] != 0, k_ref[...], 0)
                acc = jnp.dot(x_ref[...], tt, preferred_element_type=jnp.float32)
                o_ref[...] = (acc + b_ref[...].astype(jnp.float32)).astype(o_ref.dtype)
        else:
            def body(x_ref, k_ref, m_ref, o_ref):
                tt = jnp.where(m_ref[...] != 0, k_ref[...], 0)
                o_ref[...] = jnp.dot(
                    x_ref[...], tt, preferred_element_type=jnp.float32
                ).astype(o_ref.dtype)
        return body

    if use_bias:
        def body(x_ref, k_ref, m_ref, b_ref, o_ref, acc_ref):
            k_step = pl.program_id(2)

            @pl.when(k_step == 0)
            def _init():
                # Fold the bias add into the accumulator init.
                acc_ref[...] = pl.broadcast_to(
                    b_ref[...].astype(jnp.float32), acc_ref.shape
                )

            tt = jnp.where(m_ref[...] != 0, k_ref[...], 0)
            acc_ref[...] += jnp.dot(x_ref[...], tt,
                                    preferred_element_type=jnp.float32)

            @pl.when(k_step == pl.num_programs(2) - 1)
            def _finalize():
                o_ref[...] = acc_ref[...].astype(o_ref.dtype)
    else:
        def body(x_ref, k_ref, m_ref, o_ref, acc_ref):
            k_step = pl.program_id(2)

            @pl.when(k_step == 0)
            def _init():
                acc_ref[...] = jnp.zeros_like(acc_ref)

            tt = jnp.where(m_ref[...] != 0, k_ref[...], 0)
            acc_ref[...] += jnp.dot(x_ref[...], tt,
                                    preferred_element_type=jnp.float32)

            @pl.when(k_step == pl.num_programs(2) - 1)
            def _finalize():
                o_ref[...] = acc_ref[...].astype(o_ref.dtype)
    return body


def sparse_tf(x, kernel, mask, bias=None, *,
              tn_pref=512, tk_pref=1024, weight_dtype=None):
    """x: [B, D_in], kernel/mask: [D_in, D_out], bias: [D_out] or None.

    Returns x @ (kernel * mask) + bias as [B, D_out].  `mask` is the binary
    connectivity map (values exactly 0/1); it is shipped as int8 and applied
    in-kernel with a select.  `weight_dtype=jnp.bfloat16` optionally halves the
    weight/input HBM stream.
    """
    B, D_in = x.shape
    d_in_w, D_out = kernel.shape
    assert d_in_w == D_in and mask.shape == kernel.shape
    use_bias = bias is not None
    out_dtype = x.dtype

    if weight_dtype is not None:
        x = x.astype(weight_dtype)
        kernel = kernel.astype(weight_dtype)

    # ---- Pad to hardware-friendly shapes (no full-dim fallback blocks). ----
    Mp = _round_up(B, _SUBLANE)
    Kp = _round_up(D_in, _LANE)
    Np = _round_up(D_out, _LANE)

    tk = _pick_tile(Kp, tk_pref, _LANE)
    tn = _pick_tile(Np, tn_pref, _LANE)

    # ---- M tile: take the whole batch if it fits the VMEM tile budget. ----
    xb = jnp.dtype(x.dtype).itemsize
    kb = jnp.dtype(kernel.dtype).itemsize
    ob = jnp.dtype(out_dtype).itemsize
    # Double-buffered weight + int8 mask (+ bias) tiles are M-independent.
    fixed = 2 * tk * tn * (kb + 1) + (2 * tn * 4 if use_bias else 0)
    # Per M-row: double-buffered x + out tiles, plus the f32 accumulator.
    per_row = 2 * tk * xb + 2 * tn * ob + tn * 4
    tm_max = max(_SUBLANE,
                 ((_VMEM_TILE_BUDGET - fixed) // per_row) // _SUBLANE * _SUBLANE)
    tm = min(Mp, tm_max)
    Mp = _round_up(Mp, tm)

    # ---- Megacore (v7x): make sure there are >= 2 parallel grid cells. ----
    if (Mp // tm) * (Np // tn) == 1:
        if tn % (2 * _LANE) == 0:
            tn //= 2
        elif tm % (2 * _SUBLANE) == 0:
            tm //= 2
        # else: shape too small to split; single-core is fine.

    grid = (Mp // tm, Np // tn, Kp // tk)
    single_k = grid[2] == 1

    # ---- Zero-pad operands (exact: padded rows/cols contribute nothing). ----
    xp = jnp.pad(x, ((0, Mp - B), (0, Kp - D_in)))
    kp = jnp.pad(kernel, ((0, Kp - D_in), (0, Np - D_out)))
    mp = jnp.pad(mask.astype(jnp.int8), ((0, Kp - D_in), (0, Np - D_out)))

    in_specs = [
        pl.BlockSpec((tm, tk), lambda i, j, k: (i, k)),   # x
        pl.BlockSpec((tk, tn), lambda i, j, k: (k, j)),   # kernel
        pl.BlockSpec((tk, tn), lambda i, j, k: (k, j)),   # mask (int8)
    ]
    args = [xp, kp, mp]
    if use_bias:
        bp = jnp.pad(bias.astype(jnp.float32), (0, Np - D_out)).reshape(1, Np)
        in_specs.append(pl.BlockSpec((1, tn), lambda i, j, k: (0, j)))
        args.append(bp)

    out = pl.pallas_call(
        _make_kernel(use_bias, single_k),
        out_shape=jax.ShapeDtypeStruct((Mp, Np), out_dtype),
        grid_spec=pltpu.PrefetchScalarGridSpec(
            num_scalar_prefetch=0,
            grid=grid,
            in_specs=in_specs,
            out_specs=pl.BlockSpec((tm, tn), lambda i, j, k: (i, j)),
            scratch_shapes=([] if single_k
                            else [pltpu.VMEM((tm, tn), jnp.float32)]),
        ),
        compiler_params=pltpu.CompilerParams(
            dimension_semantics=("parallel", "parallel", "arbitrary"),
            vmem_limit_bytes=_VMEM_LIMIT_BYTES,
        ),
    )(*args)

    if Mp != B or Np != D_out:
        out = out[:B, :D_out]
    return out


def xavier_uniform(key, shape, dtype=jnp.float32):
    fan_in, fan_out = shape
    limit = math.sqrt(6.0 / (fan_in + fan_out))
    return jax.random.uniform(key, shape, dtype, minval=-limit, maxval=limit)


if __name__ == "__main__":
    key = jax.random.PRNGKey(0)
    k_x, k_w, k_map = jax.random.split(key, 3)

    B = 8          # batch
    D_in = 32      # input_dim  (input_shape[1])
    D_out = 128    # output_dim

    # Deterministic parameter / input construction (matches module __init__).
    x = jax.random.normal(k_x, (B, D_in), dtype=jnp.float32)
    kernel = xavier_uniform(k_w, (D_in, D_out))            # xavier_uniform_ init
    bias = jnp.zeros((D_out,), dtype=jnp.float32)          # zeros_ init, use_bias=True
    # Binary connectivity map, shipped as int8 (exact 0/1 values).
    mask_f32 = (jax.random.uniform(k_map, (D_in, D_out)) < 0.3).astype(jnp.float32)
    mask = mask_f32.astype(jnp.int8)

    out = sparse_tf(x, kernel, mask, bias)
    out = jax.block_until_ready(out)

    # Reference check against plain JAX (f32 mask path).
    ref = x @ (kernel * mask_f32) + bias
    assert out.shape == (B, D_out)
    assert jnp.allclose(out, ref, atol=1e-5, rtol=1e-5), "mismatch vs reference"

    print("KERNEL_OK")
</pallas_src>

<mosaic_0001>
module attributes {stable_mosaic.version = 11 : i64} {
  func.func @body(%arg0: i32, %arg1: i32, %arg2: i32, %arg3: memref<8x128xf32, #tpu.memory_space<vmem>>, %arg4: memref<128x128xf32, #tpu.memory_space<vmem>>, %arg5: memref<128x128xi8, #tpu.memory_space<vmem>>, %arg6: memref<1x128xf32, #tpu.memory_space<vmem>>, %arg7: memref<8x128xf32, #tpu.memory_space<vmem>>) attributes {dimension_semantics = [#tpu.dimension_semantics<parallel>, #tpu.dimension_semantics<parallel>, #tpu.dimension_semantics<arbitrary>], iteration_bounds = array<i64: 1, 1, 1>, scalar_prefetch = 0 : i64, scratch_operands = 0 : i64, tpu.core_type = #tpu.core_type<tc>, window_params = [{transform_indices = @transform_0, window_bounds = array<i64: 8, 128>}, {transform_indices = @transform_1, window_bounds = array<i64: 128, 128>}, {transform_indices = @transform_2, window_bounds = array<i64: 128, 128>}, {transform_indices = @transform_3, window_bounds = array<i64: 1, 128>}, {transform_indices = @transform_4, window_bounds = array<i64: 8, 128>}]} {
    %c0 = arith.constant 0 : index
    %c0_0 = arith.constant 0 : index
    %0 = vector.load %arg5[%c0, %c0_0] : memref<128x128xi8, #tpu.memory_space<vmem>>, vector<128x128xi8>
    %c0_i8 = arith.constant 0 : i8
    %1 = vector.broadcast %c0_i8 : i8 to vector<128x128xi8>
    %2 = arith.cmpi ne, %0, %1 : vector<128x128xi8>
    %c0_1 = arith.constant 0 : index
    %c0_2 = arith.constant 0 : index
    %3 = vector.load %arg4[%c0_1, %c0_2] : memref<128x128xf32, #tpu.memory_space<vmem>>, vector<128x128xf32>
    %c0_i32 = arith.constant 0 : i32
    %4 = arith.sitofp %c0_i32 : i32 to f32
    %5 = vector.broadcast %4 : f32 to vector<128x128xf32>
    %6 = arith.select %2, %3, %5 : vector<128x128xi1>, vector<128x128xf32>
    %c0_3 = arith.constant 0 : index
    %c0_4 = arith.constant 0 : index
    %7 = vector.load %arg3[%c0_3, %c0_4] : memref<8x128xf32, #tpu.memory_space<vmem>>, vector<8x128xf32>
    %cst = arith.constant dense<0.000000e+00> : vector<8x128xf32>
    %8 = tpu.matmul %7, %6, %cst {dimension_numbers = #tpu.dot_dimension_numbers<[1], [0], [0], [1], [0, 0, 1, 1], [], []>} : vector<8x128xf32>, vector<128x128xf32>, vector<8x128xf32> -> vector<8x128xf32>
    %c0_5 = arith.constant 0 : index
    %c0_6 = arith.constant 0 : index
    %9 = vector.load %arg6[%c0_5, %c0_6] : memref<1x128xf32, #tpu.memory_space<vmem>>, vector<1x128xf32>
    %10 = vector.broadcast %9 : vector<1x128xf32> to vector<8x128xf32>
    %11 = arith.addf %8, %10 : vector<8x128xf32>
    %c0_7 = arith.constant 0 : index
    %c0_8 = arith.constant 0 : index
    %12 = vector.load %arg7[%c0_7, %c0_8] : memref<8x128xf32, #tpu.memory_space<vmem>>, vector<8x128xf32>
    tpu.vector_store %arg7[%c0_7, %c0_8], %11 {strides = array<i32>} : memref<8x128xf32, #tpu.memory_space<vmem>>, vector<8x128xf32>,
    return
  }
  func.func @transform_0(%arg0: i32, %arg1: i32, %arg2: i32) -> (i32, i32) {
    %c0_i32 = arith.constant 0 : i32
    return %arg0, %arg2 : i32, i32
  }
  func.func @transform_1(%arg0: i32, %arg1: i32, %arg2: i32) -> (i32, i32) {
    %c0_i32 = arith.constant 0 : i32
    return %arg2, %arg1 : i32, i32
  }
  func.func @transform_2(%arg0: i32, %arg1: i32, %arg2: i32) -> (i32, i32) {
    %c0_i32 = arith.constant 0 : i32
    return %arg2, %arg1 : i32, i32
  }
  func.func @transform_3(%arg0: i32, %arg1: i32, %arg2: i32) -> (i32, i32) {
    %c0_i32 = arith.constant 0 : i32
    %c0_i32_0 = arith.constant 0 : i32
    return %c0_i32, %arg1 : i32, i32
  }
  func.func @transform_4(%arg0: i32, %arg1: i32, %arg2: i32) -> (i32, i32) {
    %c0_i32 = arith.constant 0 : i32
    return %arg0, %arg1 : i32, i32
  }
}

</mosaic_0001>

<llo_original>
// kernel: tpu_custom_call.1
$region0: #{tpu_custom_call.1}
  #allocation0 [shape = 'u32[]', space=smem, size = 0x4, offset = 0x4, fixed_abs, tag = 'smem constant byte address 0x4 - core index']
  #allocation1 [shape = 'u32[72,128]{1,0:T(1,128)}', space=vmem, size = 0x9000, scoped, tag = 'internal scratch']
  %s0 = inlined_call_operand.hbm [shape: f32[8,128], index: 0, kind: input, shape index: {}]
  %s1 = inlined_call_operand.hbm [shape: f32[128,128], index: 1, kind: input, shape index: {}]
  %s2 = inlined_call_operand.hbm [shape: s8[128,128], index: 2, kind: input, shape index: {}]
  %s3 = inlined_call_operand.vmem [shape: f32[1,128], index: 3, kind: input, shape index: {}]
  %s4 = inlined_call_operand.hbm [shape: f32[8,128], index: 4, kind: output, shape index: {}]
  %s5 = sld [smem:[#allocation0]]
  $region38: #{tpu_custom_call.1} parent=0
    _
  %s7 = ssub.s32 1, %s5
  %s8 = scalar_select 0, %s7, %s5
  $region1: #{tpu_custom_call.1} parent=0
    #allocation2 [shape = 'u8[4096]{0}', space=vmem, size = 0x1000, scoped, tag = 'input window, operand 0, single buffered']
    #allocation3 [shape = 's32[1]{0}', space=sflag, size = 0x4, scoped, tag = 'scoped memory for tpu_custom_call.1']
    #allocation4 [shape = 's32[1]{0}', space=sflag, size = 0x4, scoped, tag = 'scoped memory for tpu_custom_call.1']
    #allocation5 [shape = 'u8[65536]{0}', space=vmem, size = 0x10000, scoped, tag = 'input window, operand 1, single buffered']
    #allocation6 [shape = 's32[1]{0}', space=sflag, size = 0x4, scoped, tag = 'scoped memory for tpu_custom_call.1']
    #allocation7 [shape = 'u8[16384]{0}', space=vmem, size = 0x4000, scoped, tag = 'input window, operand 2, single buffered']
    #allocation8 [shape = 'u8[4096]{0}', space=vmem, size = 0x1000, scoped, tag = 'output window, operand 0, single buffered']
    %9 = vsyncpa [#allocation3], 0
    %10 = vsyncpa [#allocation6], 0
    %11 = vsyncpa [#allocation4], 0
    // Predicated region
    $region2: #{tpu_custom_call.1} parent=1 // pred_check
      _
    $region3: #{tpu_custom_call.1} parent=1 // pred_check_branch
      %13 = sbr.rel (0) target = $region5
    $region4: #{tpu_custom_call.1} parent=1 // pred_region
      %15 = vsyncadd [#allocation3], 0
      %s17 = sshll.u32 %s0, 4
      %s18 = int_to_ptr.hbm [resolvable:$true] %s17
      %s19 = sshll.u32 [#allocation2], 4
      %s20 = int_to_ptr.vmem [resolvable:$true] %s19
      %22 = dma.hbm_to_vmem [thread:$0]  %s18, 128, %s20, [#allocation3]
    $region5: #{tpu_custom_call.1} parent=1 // pred_fallthru
      _
    // Predicated region
    $region6: #{tpu_custom_call.1} parent=1 // pred_check
      _
    $region7: #{tpu_custom_call.1} parent=1 // pred_check_branch
      %24 = sbr.rel (0) target = $region9
    $region8: #{tpu_custom_call.1} parent=1 // pred_region
      %26 = vsyncadd [#allocation6], 0
      %s27 = sshll.u32 %s1, 4
      %s28 = int_to_ptr.hbm [resolvable:$true] %s27
      %s29 = sshll.u32 [#allocation5], 4
      %s30 = int_to_ptr.vmem [resolvable:$true] %s29
      %35 = dma.hbm_to_vmem [thread:$0]  %s28, 2048, %s30, [#allocation6], 128, 128, 8
    $region9: #{tpu_custom_call.1} parent=1 // pred_fallthru
      _
    // Predicated region
    $region10: #{tpu_custom_call.1} parent=1 // pred_check
      _
    $region11: #{tpu_custom_call.1} parent=1 // pred_check_branch
      %37 = sbr.rel (0) target = $region13
    $region12: #{tpu_custom_call.1} parent=1 // pred_region
      %39 = vsyncadd [#allocation6], 0
      %s40 = sshll.u32 %s2, 4
      %s41 = int_to_ptr.hbm [resolvable:$true] %s40
      %s42 = sshll.u32 [#allocation7], 4
      %s43 = int_to_ptr.vmem [resolvable:$true] %s42
      %48 = dma.hbm_to_vmem [thread:$0]  %s41, 512, %s43, [#allocation6], 128, 128, 8
    $region13: #{tpu_custom_call.1} parent=1 // pred_fallthru
      _
    // Predicated region
    $region14: #{tpu_custom_call.1} parent=1 // pred_check
      _
    $region15: #{tpu_custom_call.1} parent=1 // pred_check_branch
      %50 = sbr.rel (0) target = $region17
    $region16: #{tpu_custom_call.1} parent=1 // pred_region
      _
    $region17: #{tpu_custom_call.1} parent=1 // pred_fallthru
      _
    // Predicated region
    $region18: #{tpu_custom_call.1} parent=1 // pred_check
      _
    $region19: #{tpu_custom_call.1} parent=1 // pred_check_branch
      %52 = sbr.rel (0) target = $region21
    $region20: #{tpu_custom_call.1} parent=1 // pred_region
      %54 = dma.done [#allocation3], 128
    $region21: #{tpu_custom_call.1} parent=1 // pred_fallthru
      _
    // Predicated region
    $region22: #{tpu_custom_call.1} parent=1 // pred_check
      _
    $region23: #{tpu_custom_call.1} parent=1 // pred_check_branch
      %56 = sbr.rel (0) target = $region25
    $region24: #{tpu_custom_call.1} parent=1 // pred_region
      %58 = dma.done [#allocation6], 2048
    $region25: #{tpu_custom_call.1} parent=1 // pred_fallthru
      _
    // Predicated region
    $region26: #{tpu_custom_call.1} parent=1 // pred_check
      _
    $region27: #{tpu_custom_call.1} parent=1 // pred_check_branch
      %60 = sbr.rel (0) target = $region29
    $region28: #{tpu_custom_call.1} parent=1 // pred_region
      %62 = dma.done [#allocation6], 512
    $region29: #{tpu_custom_call.1} parent=1 // pred_fallthru
      _
    %v65 = vld [vmem:[#allocation7] sm:$0xff]
    %v66 = vld [vmem:[#allocation7 + $0x8] sm:$0xff]
    %v67 = vld [vmem:[#allocation7 + $0x10] sm:$0xff]
    %v68 = vld [vmem:[#allocation7 + $0x18] sm:$0xff]
    %vm69 = vnez %v65
    %vm70 = vnez %v66
    %vm71 = vnez %v67
    %vm72 = vnez %v68
    %v73 = vld [vmem:[#allocation5] sm:$0xff]
    %v74 = vld [vmem:[#allocation5 + $0x8] sm:$0xff]
    %v75 = vld [vmem:[#allocation5 + $0x10] sm:$0xff]
    %v76 = vld [vmem:[#allocation5 + $0x18] sm:$0xff]
    %v77 = vld [vmem:[#allocation5 + $0x20] sm:$0xff]
    %v78 = vld [vmem:[#allocation5 + $0x28] sm:$0xff]
    %v79 = vld [vmem:[#allocation5 + $0x30] sm:$0xff]
    %v80 = vld [vmem:[#allocation5 + $0x38] sm:$0xff]
    %v81 = vld [vmem:[#allocation5 + $0x40] sm:$0xff]
    %v82 = vld [vmem:[#allocation5 + $0x48] sm:$0xff]
    %v83 = vld [vmem:[#allocation5 + $0x50] sm:$0xff]
    %v84 = vld [vmem:[#allocation5 + $0x58] sm:$0xff]
    %v85 = vld [vmem:[#allocation5 + $0x60] sm:$0xff]
    %v86 = vld [vmem:[#allocation5 + $0x68] sm:$0xff]
    %v87 = vld [vmem:[#allocation5 + $0x70] sm:$0xff]
    %v88 = vld [vmem:[#allocation5 + $0x78] sm:$0xff]
    %v89 = vsel %vm69, 16843009, 0
    %v90 = vsel %vm70, 16843009, 0
    %v91 = vsel %vm71, 16843009, 0
    %v92 = vsel %vm72, 16843009, 0
    %v93 = vunpack.c.0.s8 %v89
    %v94 = vunpack.c.1.s8 %v89
    %v95 = vunpack.c.2.s8 %v89
    %v96 = vunpack.c.3.s8 %v89
    %v97 = vunpack.c.0.s8 %v90
    %v98 = vunpack.c.1.s8 %v90
    %v99 = vunpack.c.2.s8 %v90
    %v100 = vunpack.c.3.s8 %v90
    %v101 = vunpack.c.0.s8 %v91
    %v102 = vunpack.c.1.s8 %v91
    %v103 = vunpack.c.2.s8 %v91
    %v104 = vunpack.c.3.s8 %v91
    %v105 = vunpack.c.0.s8 %v92
    %v106 = vunpack.c.1.s8 %v92
    %v107 = vunpack.c.2.s8 %v92
    %v108 = vunpack.c.3.s8 %v92
    %v109 = vpack.c.b16 %v93, %v93
    %v110 = vpack.c.b8 %v109, %v109
    %v111 = vpack.c.b16 %v94, %v94
    %v112 = vpack.c.b8 %v111, %v111
    %v113 = vpack.c.b16 %v95, %v95
    %v114 = vpack.c.b8 %v113, %v113
    %v115 = vpack.c.b16 %v96, %v96
    %v116 = vpack.c.b8 %v115, %v115
    %v117 = vpack.c.b16 %v97, %v97
    %v118 = vpack.c.b8 %v117, %v117
    %v119 = vpack.c.b16 %v98, %v98
    %v120 = vpack.c.b8 %v119, %v119
    %v121 = vpack.c.b16 %v99, %v99
    %v122 = vpack.c.b8 %v121, %v121
    %v123 = vpack.c.b16 %v100, %v100
    %v124 = vpack.c.b8 %v123, %v123
    %v125 = vpack.c.b16 %v101, %v101
    %v126 = vpack.c.b8 %v125, %v125
    %v127 = vpack.c.b16 %v102, %v102
    %v128 = vpack.c.b8 %v127, %v127
    %v129 = vpack.c.b16 %v103, %v103
    %v130 = vpack.c.b8 %v129, %v129
    %v131 = vpack.c.b16 %v104, %v104
    %v132 = vpack.c.b8 %v131, %v131
    %v133 = vpack.c.b16 %v105, %v105
    %v134 = vpack.c.b8 %v133, %v133
    %v135 = vpack.c.b16 %v106, %v106
    %v136 = vpack.c.b8 %v135, %v135
    %v137 = vpack.c.b16 %v107, %v107
    %v138 = vpack.c.b8 %v137, %v137
    %v139 = vpack.c.b16 %v108, %v108
    %v140 = vpack.c.b8 %v139, %v139
    %vm141 = vnez %v110
    %vm142 = vnez %v112
    %vm143 = vnez %v114
    %vm144 = vnez %v116
    %vm145 = vnez %v118
    %vm146 = vnez %v120
    %vm147 = vnez %v122
    %vm148 = vnez %v124
    %vm149 = vnez %v126
    %vm150 = vnez %v128
    %vm151 = vnez %v130
    %vm152 = vnez %v132
    %vm153 = vnez %v134
    %vm154 = vnez %v136
    %vm155 = vnez %v138
    %vm156 = vnez %v140
    %v157 = vsel %vm141, 16843009, 0
    %v158 = vsel %vm142, 16843009, 0
    %v159 = vsel %vm143, 16843009, 0
    %v160 = vsel %vm144, 16843009, 0
    %v161 = vsel %vm145, 16843009, 0
    %v162 = vsel %vm146, 16843009, 0
    %v163 = vsel %vm147, 16843009, 0
    %v164 = vsel %vm148, 16843009, 0
    %v165 = vsel %vm149, 16843009, 0
    %v166 = vsel %vm150, 16843009, 0
    %v167 = vsel %vm151, 16843009, 0
    %v168 = vsel %vm152, 16843009, 0
    %v169 = vsel %vm153, 16843009, 0
    %v170 = vsel %vm154, 16843009, 0
    %v171 = vsel %vm155, 16843009, 0
    %v172 = vsel %vm156, 16843009, 0
    %v173 = vunpack.c.0.s8 %v157
    %v174 = vunpack.c.0.s8 %v158
    %v175 = vunpack.c.0.s8 %v159
    %v176 = vunpack.c.0.s8 %v160
    %v177 = vunpack.c.0.s8 %v161
    %v178 = vunpack.c.0.s8 %v162
    %v179 = vunpack.c.0.s8 %v163
    %v180 = vunpack.c.0.s8 %v164
    %v181 = vunpack.c.0.s8 %v165
    %v182 = vunpack.c.0.s8 %v166
    %v183 = vunpack.c.0.s8 %v167
    %v184 = vunpack.c.0.s8 %v168
    %v185 = vunpack.c.0.s8 %v169
    %v186 = vunpack.c.0.s8 %v170
    %v187 = vunpack.c.0.s8 %v171
    %v188 = vunpack.c.0.s8 %v172
    %vm189 = vcmp.ne.s32.totalorder %v173, 0
    %vm190 = vcmp.ne.s32.totalorder %v174, 0
    %vm191 = vcmp.ne.s32.totalorder %v175, 0
    %vm192 = vcmp.ne.s32.totalorder %v176, 0
    %vm193 = vcmp.ne.s32.totalorder %v177, 0
    %vm194 = vcmp.ne.s32.totalorder %v178, 0
    %vm195 = vcmp.ne.s32.totalorder %v179, 0
    %vm196 = vcmp.ne.s32.totalorder %v180, 0
    %vm197 = vcmp.ne.s32.totalorder %v181, 0
    %vm198 = vcmp.ne.s32.totalorder %v182, 0
    %vm199 = vcmp.ne.s32.totalorder %v183, 0
    %vm200 = vcmp.ne.s32.totalorder %v184, 0
    %vm201 = vcmp.ne.s32.totalorder %v185, 0
    %vm202 = vcmp.ne.s32.totalorder %v186, 0
    %vm203 = vcmp.ne.s32.totalorder %v187, 0
    %vm204 = vcmp.ne.s32.totalorder %v188, 0
    %v205 = vsel %vm189, %v73, 0.0
    %v206 = vsel %vm190, %v74, 0.0
    %v207 = vsel %vm191, %v75, 0.0
    %v208 = vsel %vm192, %v76, 0.0
    %v209 = vsel %vm193, %v77, 0.0
    %v210 = vsel %vm194, %v78, 0.0
    %v211 = vsel %vm195, %v79, 0.0
    %v212 = vsel %vm196, %v80, 0.0
    %v213 = vsel %vm197, %v81, 0.0
    %v214 = vsel %vm198, %v82, 0.0
    %v215 = vsel %vm199, %v83, 0.0
    %v216 = vsel %vm200, %v84, 0.0
    %v217 = vsel %vm201, %v85, 0.0
    %v218 = vsel %vm202, %v86, 0.0
    %v219 = vsel %vm203, %v87, 0.0
    %v220 = vsel %vm204, %v88, 0.0
    %v221 = vld [vmem:[#allocation2] sm:$0xff]
    %v222 = vld [vmem:[%s3] sm:$0x1]
    %v224 = vperm.slane %v222, 0
    %226 = vmatpush.msra.mxu0 %v220
    %227 = vmatpush.msra.mxu0 %v219
    %228 = vmatpush.msra.mxu0 %v218
    %229 = vmatpush.msra.mxu0 %v217
    %230 = vmatpush.msra.mxu0 %v216
    %231 = vmatpush.msra.mxu0 %v215
    %232 = vmatpush.msra.mxu0 %v214
    %233 = vmatpush.msra.mxu0 %v213
    %234 = vmatpush.msra.mxu0 %v212
    %235 = vmatpush.msra.mxu0 %v211
    %236 = vmatpush.msra.mxu0 %v210
    %237 = vmatpush.msra.mxu0 %v209
    %238 = vmatpush.msra.mxu0 %v208
    %239 = vmatpush.msra.mxu0 %v207
    %240 = vmatpush.msra.mxu0 %v206
    %241 = vmatpush.msra.mxu0 %v205
    %242 = vmatmul.f32.gmra.mxu0 %v221
    %v243 = vpop.f32.mrf.mxu0
    %v244 = vadd.f32 %v224, %v243
    %245 = vdwg.mxu0
    %246 = vst [vmem:[#allocation8] sm:$0xff] %v244
    // Predicated region
    $region30: #{tpu_custom_call.1} parent=1 // pred_check
      _
    $region31: #{tpu_custom_call.1} parent=1 // pred_check_branch
      %248 = sbr.rel (0) target = $region33
    $region32: #{tpu_custom_call.1} parent=1 // pred_region
      %250 = vsyncadd [#allocation4], 0
      %s252 = sshll.u32 [#allocation8], 4
      %s253 = int_to_ptr.vmem [resolvable:$true] %s252
      %s254 = sshll.u32 %s4, 4
      %s255 = int_to_ptr.hbm [resolvable:$true] %s254
      %257 = dma.vmem_to_hbm [thread:$0]  %s253, 128, %s255, [#allocation4]
    $region33: #{tpu_custom_call.1} parent=1 // pred_fallthru
      _
    // Predicated region
    $region34: #{tpu_custom_call.1} parent=1 // pred_check
      _
    $region35: #{tpu_custom_call.1} parent=1 // pred_check_branch
      %259 = sbr.rel (0) target = $region37
    $region36: #{tpu_custom_call.1} parent=1 // pred_region
      %261 = dma.done [#allocation4], 128
    $region37: #{tpu_custom_call.1} parent=1 // pred_fallthru
      _
    %262 = vsyncpa [#allocation3], 1
    %263 = vsyncpa [#allocation6], 1
    %264 = vsyncpa [#allocation4], 1

</llo_original>
